<compile_context>
chip_gen: v7x
topology: tpu7x:2x2x1
jax: 0.10.0
libtpu: 0.0.40
codegen_flags: <defaults>
</compile_context>

<pallas_src>
import functools
import math

import jax
import jax.numpy as jnp
from jax.experimental import pallas as pl
from jax.experimental.pallas import tpu as pltpu

LN_EPS = 1e-5  # PyTorch nn.LayerNorm default


def _vmem_and_row_tile():
    """Per-generation scoped-VMEM budget and row-tile target.

    v5e / v6e have 128 MiB VMEM -> spend ~96 MiB, 512-row tiles.
    v7x (64 MiB) or unknown     -> 32 MiB, 256-row tiles.
    """
    cap = None
    try:
        cap = getattr(pltpu.get_tpu_info(), "vmem_capacity_bytes", None)
    except Exception:
        cap = None
    if cap is not None and cap >= 100 * 1024 * 1024:
        return 96 * 1024 * 1024, 512
    return 32 * 1024 * 1024, 256


_VMEM_LIMIT, _ROW_TILE_TARGET = _vmem_and_row_tile()


def _row_tile(n):
    return n if n <= _ROW_TILE_TARGET else _ROW_TILE_TARGET


def _mosaic(dims):
    return pltpu.CompilerParams(dimension_semantics=dims,
                                vmem_limit_bytes=_VMEM_LIMIT)


def _ln(x, gamma, beta):
    """LayerNorm over the last dim (biased variance, eps=1e-5) in f32."""
    mean = jnp.mean(x, axis=-1, keepdims=True)
    var = jnp.mean(jnp.square(x - mean), axis=-1, keepdims=True)
    return (x - mean) * jax.lax.rsqrt(var + LN_EPS) * gamma + beta


# --------------------------------------------------------------------------
# Kernel 1: ln1 fused with Q projection (from x0) and the fused K|V
# projection (from x1).  Scale 1/sqrt(hd) is pre-folded into Wq / bq.
# --------------------------------------------------------------------------
def _ln_qkv_kernel(x0_ref, x1_ref, g_ref, b_ref, wq_ref, bq_ref,
                   wkv_ref, bkv_ref, q_ref, kv_ref):
    g = g_ref[...]
    b = b_ref[...]
    y0 = _ln(x0_ref[...].astype(jnp.float32), g, b)
    y1 = _ln(x1_ref[...].astype(jnp.float32), g, b)
    q_ref[...] = (jnp.dot(y0.astype(jnp.bfloat16), wq_ref[...],
                          preferred_element_type=jnp.float32)
                  + bq_ref[...]).astype(q_ref.dtype)
    kv_ref[...] = (jnp.dot(y1.astype(jnp.bfloat16), wkv_ref[...],
                           preferred_element_type=jnp.float32)
                   + bkv_ref[...]).astype(kv_ref.dtype)


def ln_qkv(x0f, x1f, ln_w, ln_b, wq_t, bq, wkv_t, bkv):
    N, E = x0f.shape
    tn = _row_tile(N)
    row = lambda i: (i, 0)
    zero = lambda i: (0, 0)
    return pl.pallas_call(
        _ln_qkv_kernel,
        out_shape=(jax.ShapeDtypeStruct((N, E), jnp.bfloat16),
                   jax.ShapeDtypeStruct((N, 2 * E), jnp.bfloat16)),
        grid=(pl.cdiv(N, tn),),
        in_specs=[pl.BlockSpec((tn, E), row),
                  pl.BlockSpec((tn, E), row),
                  pl.BlockSpec((1, E), zero),
                  pl.BlockSpec((1, E), zero),
                  # TODO(synk): on v7x the grid-invariant weights below could
                  # use pipeline_mode=pl.Buffered(1) to halve resident VMEM.
                  pl.BlockSpec((E, E), zero),
                  pl.BlockSpec((1, E), zero),
                  pl.BlockSpec((E, 2 * E), zero),
                  pl.BlockSpec((1, 2 * E), zero)],
        out_specs=(pl.BlockSpec((tn, E), row),
                   pl.BlockSpec((tn, 2 * E), row)),
        compiler_params=_mosaic(("parallel",)),
    )(x0f, x1f, ln_w, ln_b, wq_t, bq, wkv_t, bkv)


# --------------------------------------------------------------------------
# Kernel 2: cross multi-head attention, grid over (batch*head), one
# (L, hd) q/k/v block per step, full-block lane-dense store.
# --------------------------------------------------------------------------
def _mha_kernel(q_ref, k_ref, v_ref, o_ref):
    q = q_ref[0]                                      # (L, hd) bf16, scale folded
    k = k_ref[0]
    v = v_ref[0]
    s = jax.lax.dot_general(q, k, (((1,), (1,)), ((), ())),
                            preferred_element_type=jnp.float32)   # (L, L)
    s = s - jnp.max(s, axis=-1, keepdims=True)
    p = jnp.exp(s)
    p = p / jnp.sum(p, axis=-1, keepdims=True)        # exact division
    o_ref[0] = jnp.dot(p.astype(jnp.bfloat16), v,
                       preferred_element_type=jnp.float32).astype(o_ref.dtype)


def mha(q2d, kv2d, L, B, E, num_heads):
    # TODO(synk): for very long L, tile flash-style over (q-block, kv-block)
    # inside each (batch, head) grid step instead of whole-L blocks.
    hd = E // num_heads
    BH = B * num_heads

    def to_heads(x2d):   # (L*B, E) -> (B*NH, L, hd), done once by XLA
        return (x2d.reshape(L, B, num_heads, hd)
                .transpose(1, 2, 0, 3)
                .reshape(BH, L, hd))

    q = to_heads(q2d)
    k = to_heads(kv2d[:, :E])
    v = to_heads(kv2d[:, E:])
    spec = pl.BlockSpec((1, L, hd), lambda i: (i, 0, 0))
    out = pl.pallas_call(
        _mha_kernel,
        out_shape=jax.ShapeDtypeStruct((BH, L, hd), jnp.bfloat16),
        grid=(BH,),
        in_specs=[spec, spec, spec],
        out_specs=pl.BlockSpec((1, L, hd), lambda i: (i, 0, 0)),
        compiler_params=_mosaic(("parallel",)),
    )(q, k, v)
    return (out.reshape(B, num_heads, L, hd)
            .transpose(2, 0, 1, 3)
            .reshape(L * B, E))


# --------------------------------------------------------------------------
# Kernel 3: attention out-projection + residual(x0) + ln2 + the fused (E,6H)
# GRU input projection (both directions in one matmul, hoisted out of the
# sequential recurrence).  gi output is laid out (2, N, 3H) so bigru can
# select each direction via a grid index.
# --------------------------------------------------------------------------
def _proj_res_ln2_gi_kernel(a_ref, wo_ref, bo_ref, x0_ref, g2_ref, b2_ref,
                            wih_ref, bih_ref, y_ref, gi_ref, *, g3h):
    y = (jnp.dot(a_ref[...], wo_ref[...], preferred_element_type=jnp.float32)
         + bo_ref[...] + x0_ref[...])
    y_ref[...] = y.astype(y_ref.dtype)
    z = _ln(y, g2_ref[...], b2_ref[...])
    gi = (jnp.dot(z.astype(jnp.bfloat16), wih_ref[...],
                  preferred_element_type=jnp.float32) + bih_ref[...])
    gi_ref[0] = gi[:, :g3h].astype(gi_ref.dtype)
    gi_ref[1] = gi[:, g3h:].astype(gi_ref.dtype)


def proj_res_ln2_gi(attn2d, wo_t, bo, x0f, g2, b2, wih6_t, bih6, hidden):
    N, E = attn2d.shape
    G3 = 3 * hidden
    tn = _row_tile(N)
    row = lambda i: (i, 0)
    zero = lambda i: (0, 0)
    kern = functools.partial(_proj_res_ln2_gi_kernel, g3h=G3)
    return pl.pallas_call(
        kern,
        out_shape=(jax.ShapeDtypeStruct((N, E), jnp.float32),
                   jax.ShapeDtypeStruct((2, N, G3), jnp.float32)),
        grid=(pl.cdiv(N, tn),),
        in_specs=[pl.BlockSpec((tn, E), row),
                  pl.BlockSpec((E, E), zero),
                  pl.BlockSpec((1, E), zero),
                  pl.BlockSpec((tn, E), row),
                  pl.BlockSpec((1, E), zero),
                  pl.BlockSpec((1, E), zero),
                  pl.BlockSpec((E, 2 * G3), zero),
                  pl.BlockSpec((1, 2 * G3), zero)],
        out_specs=(pl.BlockSpec((tn, E), row),
                   pl.BlockSpec((2, tn, G3), lambda i: (0, i, 0))),
        compiler_params=_mosaic(("parallel",)),
    )(attn2d, wo_t, bo, x0f, g2, b2, wih6_t, bih6)


# --------------------------------------------------------------------------
# Kernel 4: bidirectional GRU recurrence.  Grid = (direction, time-chunk);
# the direction axis is "parallel" (on v7x each TensorCore runs one
# direction), the backward direction is fed / written through reversed
# time index_maps, and only the irreducible h @ W_hh work stays in the loop.
# --------------------------------------------------------------------------
def _bigru_kernel(gi_ref, whh_ref, bhn_ref, o_ref, h_scr, *, tl, hidden,
                  seq_len):
    d = pl.program_id(0)
    c = pl.program_id(1)
    nchunks = pl.num_programs(1)
    H = hidden
    B = h_scr.shape[0]

    @pl.when(c == 0)
    def _():
        h_scr[...] = jnp.zeros_like(h_scr)

    whh = whh_ref[0]                                   # (H, 3H) bf16
    # r/z hidden biases were folded into the precomputed input projection at
    # prepare_params time; only the n-gate hidden bias remains, hoisted here.
    bhn = jnp.broadcast_to(bhn_ref[0].astype(jnp.float32), (B, H))
    needs_mask = (seq_len % tl) != 0
    t_base = (c + d * (nchunks - 1 - 2 * c)) * tl      # same as the index_map

    def step(i, carry):
        idx = i + d * (tl - 1 - 2 * i)                 # fwd: i, bwd: tl-1-i
        h = h_scr[...]
        gi = gi_ref[0, idx]                            # (B, 3H) f32
        gh = jnp.dot(h.astype(jnp.bfloat16), whh,
                     preferred_element_type=jnp.float32)
        r = jax.nn.sigmoid(gi[:, 0:H] + gh[:, 0:H])
        z = jax.nn.sigmoid(gi[:, H:2 * H] + gh[:, H:2 * H])
        n = jnp.tanh(gi[:, 2 * H:3 * H] + r * (gh[:, 2 * H:3 * H] + bhn))
        h_new = (1.0 - z) * n + z * h
        if needs_mask:  # guard pad rows of the boundary chunk (tl need not | L)
            h_new = jnp.where(t_base + idx < seq_len, h_new, h)
        h_scr[...] = h_new
        o_ref[0, idx] = h_new.astype(o_ref.dtype)
        return carry

    jax.lax.fori_loop(0, tl, step, 0, unroll=min(tl, 8))


def bigru(gi4, whh2, bhn2, hidden, seq_len):
    # gi4: (2, L, B, 3H); whh2: (2, H, 3H) bf16; bhn2: (2, 1, H) f32
    _, L, B, G3 = gi4.shape
    H = hidden
    tl = min(L, 32)
    nchunks = pl.cdiv(L, tl)

    def tmap(d, c):
        # forward (d=0): chunk c ; backward (d=1): chunk nchunks-1-c
        return c + d * (nchunks - 1 - 2 * c)

    kern = functools.partial(_bigru_kernel, tl=tl, hidden=H, seq_len=L)
    return pl.pallas_call(
        kern,
        out_shape=jax.ShapeDtypeStruct((2, L, B, H), jnp.float32),
        grid=(2, nchunks),
        in_specs=[pl.BlockSpec((1, tl, B, G3),
                               lambda d, c: (d, tmap(d, c), 0, 0)),
                  pl.BlockSpec((1, H, G3), lambda d, c: (d, 0, 0)),
                  pl.BlockSpec((1, 1, H), lambda d, c: (d, 0, 0))],
        out_specs=pl.BlockSpec((1, tl, B, H),
                               lambda d, c: (d, tmap(d, c), 0, 0)),
        scratch_shapes=[pltpu.VMEM((B, H), jnp.float32)],
        compiler_params=_mosaic(("parallel", "arbitrary")),
    )(gi4, whh2, bhn2)


# --------------------------------------------------------------------------
# Kernel 5: GELU -> fc (whole (2H,E) weight, single 2H-deep matmul)
# -> (dropout = identity in eval) -> residual(y) -> ln3.
# --------------------------------------------------------------------------
def _gelu_fc_res_ln3_kernel(hf_ref, hb_ref, w_ref, b_ref, y_ref,
                            g3_ref, b3_ref, o_ref):
    h = jnp.concatenate([hf_ref[0], hb_ref[0]], axis=-1)   # (tn, 2H) f32
    g = jax.nn.gelu(h, approximate=False)
    z = (jnp.dot(g.astype(jnp.bfloat16), w_ref[...],
                 preferred_element_type=jnp.float32)
         + b_ref[...] + y_ref[...])
    # TODO(synk): nn.Dropout() is identity in eval mode; no dropout mask here.
    o_ref[...] = _ln(z, g3_ref[...], b3_ref[...]).astype(o_ref.dtype)


def gelu_fc_res_ln3(h2, fc_w_t, fc_b, y2d, g3, b3):
    _, N, H = h2.shape
    E = fc_w_t.shape[1]
    tn = _row_tile(N)
    row = lambda i: (i, 0)
    zero = lambda i: (0, 0)
    return pl.pallas_call(
        _gelu_fc_res_ln3_kernel,
        out_shape=jax.ShapeDtypeStruct((N, E), jnp.float32),
        grid=(pl.cdiv(N, tn),),
        in_specs=[pl.BlockSpec((1, tn, H), lambda i: (0, i, 0)),
                  pl.BlockSpec((1, tn, H), lambda i: (1, i, 0)),
                  pl.BlockSpec((2 * H, E), zero),
                  pl.BlockSpec((1, E), zero),
                  pl.BlockSpec((tn, E), row),
                  pl.BlockSpec((1, E), zero),
                  pl.BlockSpec((1, E), zero)],
        out_specs=pl.BlockSpec((tn, E), row),
        compiler_params=_mosaic(("parallel",)),
    )(h2, h2, fc_w_t, fc_b, y2d, g3, b3)


# ------------------------------ Forward pass --------------------------------

def transformer_ca_forward(kp, x0, x1):
    """x0, x1: [L, B, E] -> [L, B, E]  (eval-mode forward of Transformer_CA).

    `kp` must come from prepare_params() (kernel-layout / bf16 weights).
    All reshapes below only split/merge leading axes (free in XLA); the only
    real data movement outside kernels is the once-per-call head transpose.
    """
    L, B, E = x0.shape
    NH = kp["num_heads"]
    H = kp["hidden_size"]
    N = L * B

    x0f = x0.reshape(N, E).astype(jnp.float32)
    x1f = x1.reshape(N, E).astype(jnp.float32)

    # ln1 + Q / fused K|V projections (1/sqrt(hd) folded into Wq, bq).
    q2d, kv2d = ln_qkv(x0f, x1f, kp["ln1_w"], kp["ln1_b"],
                       kp["wq_t"], kp["bq"], kp["wkv_t"], kp["bkv"])

    attn2d = mha(q2d, kv2d, L, B, E, NH)

    # out-projection + residual(x0) + ln2 + hoisted fused GRU input projection.
    y2d, gi = proj_res_ln2_gi(attn2d, kp["wo_t"], kp["bo"], x0f,
                              kp["ln2_w"], kp["ln2_b"],
                              kp["wih6_t"], kp["bih6"], H)

    # bidirectional GRU recurrence (direction = parallel grid axis).
    h2 = bigru(gi.reshape(2, L, B, 3 * H), kp["whh2"], kp["bhn2"], H, L)

    # gelu -> fc -> (dropout=identity) -> residual(y) -> ln3.
    out = gelu_fc_res_ln3(h2.reshape(2, N, H), kp["fc_w_t"], kp["fc_b"],
                          y2d, kp["ln3_w"], kp["ln3_b"])
    return out.reshape(L, B, E)


# ------------------------------ Parameters -----------------------------------

def init_params(key, embed_dim, hidden_size, num_heads):
    """PyTorch-layout parameters (as a torch state_dict would provide them)."""
    E, H = embed_dim, hidden_size
    ks = jax.random.split(key, 14)
    rnd = lambda k, shape, s=0.1: (s * jax.random.normal(k, shape)).astype(jnp.float32)
    ones = lambda n: jnp.ones((n,), jnp.float32)
    zeros = lambda n: jnp.zeros((n,), jnp.float32)
    return dict(
        num_heads=num_heads,
        ln1_w=ones(E), ln1_b=zeros(E),
        in_proj_w=rnd(ks[0], (3 * E, E)), in_proj_b=rnd(ks[1], (3 * E,)),
        out_proj_w=rnd(ks[2], (E, E)), out_proj_b=rnd(ks[3], (E,)),
        ln2_w=ones(E), ln2_b=zeros(E),
        gru_wih_f=rnd(ks[4], (3 * H, E)), gru_whh_f=rnd(ks[5], (3 * H, H)),
        gru_bih_f=rnd(ks[6], (3 * H,)), gru_bhh_f=rnd(ks[7], (3 * H,)),
        gru_wih_b=rnd(ks[8], (3 * H, E)), gru_whh_b=rnd(ks[9], (3 * H, H)),
        gru_bih_b=rnd(ks[10], (3 * H,)), gru_bhh_b=rnd(ks[11], (3 * H,)),
        fc_w=rnd(ks[12], (E, 2 * H)), fc_b=rnd(ks[13], (E,)),
        ln3_w=ones(E), ln3_b=zeros(E),
    )


def prepare_params(p):
    """Pre-transpose / fuse / fold / bf16-cast all weights ONCE."""
    E = p["ln1_w"].shape[0]
    H = p["gru_whh_f"].shape[1]
    NH = p["num_heads"]
    hd = E // NH
    scale = 1.0 / math.sqrt(hd)
    bf16 = lambda a: a.astype(jnp.bfloat16)
    row = lambda v: v.reshape(1, -1).astype(jnp.float32)

    w_in, b_in = p["in_proj_w"], p["in_proj_b"]
    wq, bq = w_in[0:E] * scale, b_in[0:E] * scale        # fold 1/sqrt(hd)
    wk, bk = w_in[E:2 * E], b_in[E:2 * E]
    wv, bv = w_in[2 * E:3 * E], b_in[2 * E:3 * E]

    def fold_bias(bih, bhh):
        # b_hr / b_hz fold into the precomputed input projection; only b_hn
        # must stay inside the r*(...) term of the recurrence.
        return jnp.concatenate([bih[:2 * H] + bhh[:2 * H], bih[2 * H:]])

    bih_f = fold_bias(p["gru_bih_f"], p["gru_bhh_f"])
    bih_b = fold_bias(p["gru_bih_b"], p["gru_bhh_b"])

    return dict(
        num_heads=NH, hidden_size=H,
        ln1_w=row(p["ln1_w"]), ln1_b=row(p["ln1_b"]),
        wq_t=bf16(wq.T), bq=row(bq),
        wkv_t=bf16(jnp.concatenate([wk.T, wv.T], axis=1)),      # (E, 2E)
        bkv=row(jnp.concatenate([bk, bv])),
        wo_t=bf16(p["out_proj_w"].T), bo=row(p["out_proj_b"]),
        ln2_w=row(p["ln2_w"]), ln2_b=row(p["ln2_b"]),
        wih6_t=bf16(jnp.concatenate([p["gru_wih_f"].T,
                                     p["gru_wih_b"].T], axis=1)),  # (E, 6H)
        bih6=row(jnp.concatenate([bih_f, bih_b])),
        whh2=bf16(jnp.stack([p["gru_whh_f"].T, p["gru_whh_b"].T])),  # (2,H,3H)
        bhn2=jnp.stack([p["gru_bhh_f"][2 * H:].reshape(1, H),
                        p["gru_bhh_b"][2 * H:].reshape(1, H)]
                       ).astype(jnp.float32),                        # (2,1,H)
        fc_w_t=bf16(p["fc_w"].T), fc_b=row(p["fc_b"]),               # (2H,E)
        ln3_w=row(p["ln3_w"]), ln3_b=row(p["ln3_b"]),
    )


if __name__ == "__main__":
    L, B, E, H, NH = 8, 2, 32, 32, 4   # seq, batch, embed_dim, hidden_size, heads
    key = jax.random.PRNGKey(0)
    k_par, kx0, kx1 = jax.random.split(key, 3)
    params = init_params(k_par, E, H, NH)
    kparams = prepare_params(params)
    x0 = jax.random.normal(kx0, (L, B, E), jnp.float32)
    x1 = jax.random.normal(kx1, (L, B, E), jnp.float32)

    out = transformer_ca_forward(kparams, x0, x1)
    out = jax.block_until_ready(out)
    assert out.shape == (L, B, E)
    assert bool(jnp.all(jnp.isfinite(out)))
    print("KERNEL_OK")
</pallas_src>

<mosaic_0001>
module attributes {stable_mosaic.version = 11 : i64} {
  func.func @_ln_qkv_kernel(%arg0: i32, %arg1: memref<16x32xf32, #tpu.memory_space<vmem>>, %arg2: memref<16x32xf32, #tpu.memory_space<vmem>>, %arg3: memref<1x32xf32, #tpu.memory_space<vmem>>, %arg4: memref<1x32xf32, #tpu.memory_space<vmem>>, %arg5: memref<32x32xbf16, #tpu.memory_space<vmem>>, %arg6: memref<1x32xf32, #tpu.memory_space<vmem>>, %arg7: memref<32x64xbf16, #tpu.memory_space<vmem>>, %arg8: memref<1x64xf32, #tpu.memory_space<vmem>>, %arg9: memref<16x32xbf16, #tpu.memory_space<vmem>>, %arg10: memref<16x64xbf16, #tpu.memory_space<vmem>>) attributes {dimension_semantics = [#tpu.dimension_semantics<parallel>], iteration_bounds = array<i64: 1>, scalar_prefetch = 0 : i64, scratch_operands = 0 : i64, tpu.core_type = #tpu.core_type<tc>, window_params = [{transform_indices = @transform_0, window_bounds = array<i64: 16, 32>}, {transform_indices = @transform_1, window_bounds = array<i64: 16, 32>}, {pipeline_mode = #tpu.pipeline_mode<synchronous>, transform_indices = @transform_2, window_bounds = array<i64: 1, 32>}, {pipeline_mode = #tpu.pipeline_mode<synchronous>, transform_indices = @transform_3, window_bounds = array<i64: 1, 32>}, {pipeline_mode = #tpu.pipeline_mode<synchronous>, transform_indices = @transform_4, window_bounds = array<i64: 32, 32>}, {pipeline_mode = #tpu.pipeline_mode<synchronous>, transform_indices = @transform_5, window_bounds = array<i64: 1, 32>}, {pipeline_mode = #tpu.pipeline_mode<synchronous>, transform_indices = @transform_6, window_bounds = array<i64: 32, 64>}, {pipeline_mode = #tpu.pipeline_mode<synchronous>, transform_indices = @transform_7, window_bounds = array<i64: 1, 64>}, {transform_indices = @transform_8, window_bounds = array<i64: 16, 32>}, {transform_indices = @transform_9, window_bounds = array<i64: 16, 64>}]} {
    %c0 = arith.constant 0 : index
    %c0_0 = arith.constant 0 : index
    %0 = vector.load %arg3[%c0, %c0_0] : memref<1x32xf32, #tpu.memory_space<vmem>>, vector<1x32xf32>
    %c0_1 = arith.constant 0 : index
    %c0_2 = arith.constant 0 : index
    %1 = vector.load %arg4[%c0_1, %c0_2] : memref<1x32xf32, #tpu.memory_space<vmem>>, vector<1x32xf32>
    %c0_3 = arith.constant 0 : index
    %c0_4 = arith.constant 0 : index
    %2 = vector.load %arg1[%c0_3, %c0_4] : memref<16x32xf32, #tpu.memory_space<vmem>>, vector<16x32xf32>
    %cst = arith.constant dense<0.000000e+00> : vector<16xf32>
    %3 = vector.multi_reduction <add>, %2, %cst [1] : vector<16x32xf32> to vector<16xf32>
    %4 = vector.shape_cast %3 : vector<16xf32> to vector<16x1xf32>
    %cst_5 = arith.constant 3.200000e+01 : f32
    %5 = vector.broadcast %cst_5 : f32 to vector<16x1xf32>
    %6 = arith.divf %4, %5 : vector<16x1xf32>
    %7 = vector.broadcast %6 : vector<16x1xf32> to vector<16x32xf32>
    %8 = arith.subf %2, %7 : vector<16x32xf32>
    %9 = arith.mulf %8, %8 : vector<16x32xf32>
    %cst_6 = arith.constant dense<0.000000e+00> : vector<16xf32>
    %10 = vector.multi_reduction <add>, %9, %cst_6 [1] : vector<16x32xf32> to vector<16xf32>
    %11 = vector.shape_cast %10 : vector<16xf32> to vector<16x1xf32>
    %cst_7 = arith.constant 3.200000e+01 : f32
    %12 = vector.broadcast %cst_7 : f32 to vector<16x1xf32>
    %13 = arith.divf %11, %12 : vector<16x1xf32>
    %14 = vector.broadcast %6 : vector<16x1xf32> to vector<16x32xf32>
    %15 = arith.subf %2, %14 : vector<16x32xf32>
    %cst_8 = arith.constant 9.99999974E-6 : f32
    %16 = vector.broadcast %cst_8 : f32 to vector<16x1xf32>
    %17 = arith.addf %13, %16 : vector<16x1xf32>
    %18 = math.rsqrt %17 : vector<16x1xf32>
    %19 = vector.broadcast %18 : vector<16x1xf32> to vector<16x32xf32>
    %20 = arith.mulf %15, %19 : vector<16x32xf32>
    %21 = vector.broadcast %0 : vector<1x32xf32> to vector<16x32xf32>
    %22 = arith.mulf %20, %21 : vector<16x32xf32>
    %23 = vector.broadcast %1 : vector<1x32xf32> to vector<16x32xf32>
    %24 = arith.addf %22, %23 : vector<16x32xf32>
    %c0_9 = arith.constant 0 : index
    %c0_10 = arith.constant 0 : index
    %25 = vector.load %arg2[%c0_9, %c0_10] : memref<16x32xf32, #tpu.memory_space<vmem>>, vector<16x32xf32>
    %cst_11 = arith.constant dense<0.000000e+00> : vector<16xf32>
    %26 = vector.multi_reduction <add>, %25, %cst_11 [1] : vector<16x32xf32> to vector<16xf32>
    %27 = vector.shape_cast %26 : vector<16xf32> to vector<16x1xf32>
    %cst_12 = arith.constant 3.200000e+01 : f32
    %28 = vector.broadcast %cst_12 : f32 to vector<16x1xf32>
    %29 = arith.divf %27, %28 : vector<16x1xf32>
    %30 = vector.broadcast %29 : vector<16x1xf32> to vector<16x32xf32>
    %31 = arith.subf %25, %30 : vector<16x32xf32>
    %32 = arith.mulf %31, %31 : vector<16x32xf32>
    %cst_13 = arith.constant dense<0.000000e+00> : vector<16xf32>
    %33 = vector.multi_reduction <add>, %32, %cst_13 [1] : vector<16x32xf32> to vector<16xf32>
    %34 = vector.shape_cast %33 : vector<16xf32> to vector<16x1xf32>
    %cst_14 = arith.constant 3.200000e+01 : f32
    %35 = vector.broadcast %cst_14 : f32 to vector<16x1xf32>
    %36 = arith.divf %34, %35 : vector<16x1xf32>
    %37 = vector.broadcast %29 : vector<16x1xf32> to vector<16x32xf32>
    %38 = arith.subf %25, %37 : vector<16x32xf32>
    %cst_15 = arith.constant 9.99999974E-6 : f32
    %39 = vector.broadcast %cst_15 : f32 to vector<16x1xf32>
    %40 = arith.addf %36, %39 : vector<16x1xf32>
    %41 = math.rsqrt %40 : vector<16x1xf32>
    %42 = vector.broadcast %41 : vector<16x1xf32> to vector<16x32xf32>
    %43 = arith.mulf %38, %42 : vector<16x32xf32>
    %44 = vector.broadcast %0 : vector<1x32xf32> to vector<16x32xf32>
    %45 = arith.mulf %43, %44 : vector<16x32xf32>
    %46 = vector.broadcast %1 : vector<1x32xf32> to vector<16x32xf32>
    %47 = arith.addf %45, %46 : vector<16x32xf32>
    %48 = arith.truncf %24 : vector<16x32xf32> to vector<16x32xbf16>
    %c0_16 = arith.constant 0 : index
    %c0_17 = arith.constant 0 : index
    %49 = vector.load %arg5[%c0_16, %c0_17] : memref<32x32xbf16, #tpu.memory_space<vmem>>, vector<32x32xbf16>
    %cst_18 = arith.constant dense<0.000000e+00> : vector<16x32xf32>
    %50 = tpu.matmul %48, %49, %cst_18 {dimension_numbers = #tpu.dot_dimension_numbers<[1], [0], [0], [1], [0, 0, 1, 1], [], []>} : vector<16x32xbf16>, vector<32x32xbf16>, vector<16x32xf32> -> vector<16x32xf32>
    %c0_19 = arith.constant 0 : index
    %c0_20 = arith.constant 0 : index
    %51 = vector.load %arg6[%c0_19, %c0_20] : memref<1x32xf32, #tpu.memory_space<vmem>>, vector<1x32xf32>
    %52 = vector.broadcast %51 : vector<1x32xf32> to vector<16x32xf32>
    %53 = arith.addf %50, %52 : vector<16x32xf32>
    %54 = arith.truncf %53 : vector<16x32xf32> to vector<16x32xbf16>
    %c0_21 = arith.constant 0 : index
    %c0_22 = arith.constant 0 : index
    %55 = vector.load %arg9[%c0_21, %c0_22] : memref<16x32xbf16, #tpu.memory_space<vmem>>, vector<16x32xbf16>
    tpu.vector_store %arg9[%c0_21, %c0_22], %54 {strides = array<i32>} : memref<16x32xbf16, #tpu.memory_space<vmem>>, vector<16x32xbf16>,
    %56 = arith.truncf %47 : vector<16x32xf32> to vector<16x32xbf16>
    %c0_23 = arith.constant 0 : index
    %c0_24 = arith.constant 0 : index
    %57 = vector.load %arg7[%c0_23, %c0_24] : memref<32x64xbf16, #tpu.memory_space<vmem>>, vector<32x64xbf16>
    %cst_25 = arith.constant dense<0.000000e+00> : vector<16x64xf32>
    %58 = tpu.matmul %56, %57, %cst_25 {dimension_numbers = #tpu.dot_dimension_numbers<[1], [0], [0], [1], [0, 0, 1, 1], [], []>} : vector<16x32xbf16>, vector<32x64xbf16>, vector<16x64xf32> -> vector<16x64xf32>
    %c0_26 = arith.constant 0 : index
    %c0_27 = arith.constant 0 : index
    %59 = vector.load %arg8[%c0_26, %c0_27] : memref<1x64xf32, #tpu.memory_space<vmem>>, vector<1x64xf32>
    %60 = vector.broadcast %59 : vector<1x64xf32> to vector<16x64xf32>
    %61 = arith.addf %58, %60 : vector<16x64xf32>
    %62 = arith.truncf %61 : vector<16x64xf32> to vector<16x64xbf16>
    %c0_28 = arith.constant 0 : index
    %c0_29 = arith.constant 0 : index
    %63 = vector.load %arg10[%c0_28, %c0_29] : memref<16x64xbf16, #tpu.memory_space<vmem>>, vector<16x64xbf16>
    tpu.vector_store %arg10[%c0_28, %c0_29], %62 {strides = array<i32>} : memref<16x64xbf16, #tpu.memory_space<vmem>>, vector<16x64xbf16>,
    return
  }
  func.func @transform_0(%arg0: i32) -> (i32, i32) {
    %c0_i32 = arith.constant 0 : i32
    %c0_i32_0 = arith.constant 0 : i32
    return %arg0, %c0_i32 : i32, i32
  }
  func.func @transform_1(%arg0: i32) -> (i32, i32) {
    %c0_i32 = arith.constant 0 : i32
    %c0_i32_0 = arith.constant 0 : i32
    return %arg0, %c0_i32 : i32, i32
  }
  func.func @transform_2(%arg0: i32) -> (i32, i32) {
    %c0_i32 = arith.constant 0 : i32
    %c0_i32_0 = arith.constant 0 : i32
    %c0_i32_1 = arith.constant 0 : i32
    return %c0_i32, %c0_i32_0 : i32, i32
  }
  func.func @transform_3(%arg0: i32) -> (i32, i32) {
    %c0_i32 = arith.constant 0 : i32
    %c0_i32_0 = arith.constant 0 : i32
    %c0_i32_1 = arith.constant 0 : i32
    return %c0_i32, %c0_i32_0 : i32, i32
  }
  func.func @transform_4(%arg0: i32) -> (i32, i32) {
    %c0_i32 = arith.constant 0 : i32
    %c0_i32_0 = arith.constant 0 : i32
    %c0_i32_1 = arith.constant 0 : i32
    return %c0_i32, %c0_i32_0 : i32, i32
  }
  func.func @transform_5(%arg0: i32) -> (i32, i32) {
    %c0_i32 = arith.constant 0 : i32
    %c0_i32_0 = arith.constant 0 : i32
    %c0_i32_1 = arith.constant 0 : i32
    return %c0_i32, %c0_i32_0 : i32, i32
  }
  func.func @transform_6(%arg0: i32) -> (i32, i32) {
    %c0_i32 = arith.constant 0 : i32
    %c0_i32_0 = arith.constant 0 : i32
    %c0_i32_1 = arith.constant 0 : i32
    return %c0_i32, %c0_i32_0 : i32, i32
  }
  func.func @transform_7(%arg0: i32) -> (i32, i32) {
    %c0_i32 = arith.constant 0 : i32
    %c0_i32_0 = arith.constant 0 : i32
    %c0_i32_1 = arith.constant 0 : i32
    return %c0_i32, %c0_i32_0 : i32, i32
  }
  func.func @transform_8(%arg0: i32) -> (i32, i32) {
    %c0_i32 = arith.constant 0 : i32
    %c0_i32_0 = arith.constant 0 : i32
    return %arg0, %c0_i32 : i32, i32
  }
  func.func @transform_9(%arg0: i32) -> (i32, i32) {
    %c0_i32 = arith.constant 0 : i32
    %c0_i32_0 = arith.constant 0 : i32
    return %arg0, %c0_i32 : i32, i32
  }
}

</mosaic_0001>

<llo_original>
// kernel: tpu_custom_call.1
$region0: #{tpu_custom_call.1}
  #allocation0 [shape = 'u32[]', space=smem, size = 0x4, offset = 0x4, fixed_abs, tag = 'smem constant byte address 0x4 - core index']
  #allocation1 [shape = 'u32[144,128]{1,0:T(1,128)}', space=vmem, size = 0x12000, scoped, tag = 'internal scratch']
  %s0 = inlined_call_operand.hbm [shape: f32[16,32], index: 0, kind: input, shape index: {}]
  %s1 = inlined_call_operand.hbm [shape: f32[16,32], index: 1, kind: input, shape index: {}]
  %s2 = inlined_call_operand.vmem [shape: f32[1,32], index: 2, kind: input, shape index: {}]
  %s3 = inlined_call_operand.vmem [shape: f32[1,32], index: 3, kind: input, shape index: {}]
  %s4 = inlined_call_operand.hbm [shape: bf16[32,32], index: 4, kind: input, shape index: {}]
  %s5 = inlined_call_operand.vmem [shape: f32[1,32], index: 5, kind: input, shape index: {}]
  %s6 = inlined_call_operand.vmem [shape: bf16[32,64], index: 6, kind: input, shape index: {}]
  %s7 = inlined_call_operand.vmem [shape: f32[1,64], index: 7, kind: input, shape index: {}]
  %s8 = inlined_call_operand.hbm [shape: bf16[16,32], index: 8, kind: output, shape index: {0}]
  %s9 = inlined_call_operand.hbm [shape: bf16[16,64], index: 9, kind: output, shape index: {1}]
  %10 = xla_tuple %s8, %s9
  %s11 = sld [smem:[#allocation0]]
  $region62: #{tpu_custom_call.1} parent=0
    _
  %s13 = ssub.s32 1, %s11
  %s14 = scalar_select 0, %s13, %s11
  $region1: #{tpu_custom_call.1} parent=0
    #allocation2 [shape = 'u8[8192]{0}', space=vmem, size = 0x2000, scoped, tag = 'input window, operand 0, single buffered']
    #allocation3 [shape = 's32[1]{0}', space=sflag, size = 0x4, scoped, tag = 'scoped memory for tpu_custom_call.1']
    #allocation4 [shape = 's32[1]{0}', space=sflag, size = 0x4, scoped, tag = 'scoped memory for tpu_custom_call.1']
    #allocation5 [shape = 'u8[8192]{0}', space=vmem, size = 0x2000, scoped, tag = 'input window, operand 1, single buffered']
    #allocation6 [shape = 's32[1]{0}', space=sflag, size = 0x4, scoped, tag = 'scoped memory for tpu_custom_call.1']
    #allocation7 [shape = 'u8[8192]{0}', space=vmem, size = 0x2000, scoped, tag = 'input window, operand 4, single buffered']
    #allocation8 [shape = 'u8[4096]{0}', space=vmem, size = 0x1000, scoped, tag = 'output window, operand 0, single buffered']
    #allocation9 [shape = 'u8[4096]{0}', space=vmem, size = 0x1000, scoped, tag = 'output window, operand 1, single buffered']
    #allocation10 [shape = 's32[1]{0}', space=sflag, size = 0x4, scoped, tag = 'scoped memory for tpu_custom_call.1']
    %15 = vsyncpa [#allocation3], 0
    %16 = vsyncpa [#allocation6], 0
    %17 = vsyncpa [#allocation4], 0
    %18 = vsyncpa [#allocation10], 0
    // Predicated region
    $region2: #{tpu_custom_call.1} parent=1 // pred_check
      _
    $region3: #{tpu_custom_call.1} parent=1 // pred_check_branch
      %20 = sbr.rel (0) target = $region5
    $region4: #{tpu_custom_call.1} parent=1 // pred_region
      %s22 = ssub.s32 256, 256
      %23 = vsyncadd [#allocation3], %s22
      %s24 = sshll.u32 [#allocation2], 4
      %s25 = int_to_ptr.vmem [resolvable:$true] %s24
      %30 = dma.hbm_to_vmem [thread:$0]  %s0, 256, %s25, [#allocation3], 128, 128, 8
    $region5: #{tpu_custom_call.1} parent=1 // pred_fallthru
      _
    // Predicated region
    $region6: #{tpu_custom_call.1} parent=1 // pred_check
      _
    $region7: #{tpu_custom_call.1} parent=1 // pred_check_branch
      %32 = sbr.rel (0) target = $region9
    $region8: #{tpu_custom_call.1} parent=1 // pred_region
      %s34 = ssub.s32 256, 256
      %35 = vsyncadd [#allocation6], %s34
      %s36 = sshll.u32 [#allocation5], 4
      %s37 = int_to_ptr.vmem [resolvable:$true] %s36
      %42 = dma.hbm_to_vmem [thread:$0]  %s1, 256, %s37, [#allocation6], 128, 128, 8
    $region9: #{tpu_custom_call.1} parent=1 // pred_fallthru
      _
    // Predicated region
    $region10: #{tpu_custom_call.1} parent=1 // pred_check
      _
    $region11: #{tpu_custom_call.1} parent=1 // pred_check_branch
      %44 = sbr.rel (0) target = $region13
    $region12: #{tpu_custom_call.1} parent=1 // pred_region
      _
    $region13: #{tpu_custom_call.1} parent=1 // pred_fallthru
      _
    // Predicated region
    $region14: #{tpu_custom_call.1} parent=1 // pred_check
      _
    $region15: #{tpu_custom_call.1} parent=1 // pred_check_branch
      %46 = sbr.rel (0) target = $region17
    $region16: #{tpu_custom_call.1} parent=1 // pred_region
      _
    $region17: #{tpu_custom_call.1} parent=1 // pred_fallthru
      _
    // Predicated region
    $region18: #{tpu_custom_call.1} parent=1 // pred_check
      _
    $region19: #{tpu_custom_call.1} parent=1 // pred_check_branch
      %48 = sbr.rel (0) target = $region21
    $region20: #{tpu_custom_call.1} parent=1 // pred_region
      %s50 = ssub.s32 256, 256
      %51 = vsyncadd [#allocation6], %s50
      %s52 = sshll.u32 [#allocation7], 4
      %s53 = int_to_ptr.vmem [resolvable:$true] %s52
      %58 = dma.hbm_to_vmem [thread:$0]  %s4, 256, %s53, [#allocation6], 64, 64, 4
    $region21: #{tpu_custom_call.1} parent=1 // pred_fallthru
      _
    // Predicated region
    $region22: #{tpu_custom_call.1} parent=1 // pred_check
      _
    $region23: #{tpu_custom_call.1} parent=1 // pred_check_branch
      %60 = sbr.rel (0) target = $region25
    $region24: #{tpu_custom_call.1} parent=1 // pred_region
      _
    $region25: #{tpu_custom_call.1} parent=1 // pred_fallthru
      _
    // Predicated region
    $region26: #{tpu_custom_call.1} parent=1 // pred_check
      _
    $region27: #{tpu_custom_call.1} parent=1 // pred_check_branch
      %62 = sbr.rel (0) target = $region29
    $region28: #{tpu_custom_call.1} parent=1 // pred_region
      _
    $region29: #{tpu_custom_call.1} parent=1 // pred_fallthru
      _
    // Predicated region
    $region30: #{tpu_custom_call.1} parent=1 // pred_check
      _
    $region31: #{tpu_custom_call.1} parent=1 // pred_check_branch
      %64 = sbr.rel (0) target = $region33
    $region32: #{tpu_custom_call.1} parent=1 // pred_region
      _
    $region33: #{tpu_custom_call.1} parent=1 // pred_fallthru
      _
    // Predicated region
    $region34: #{tpu_custom_call.1} parent=1 // pred_check
      _
    $region35: #{tpu_custom_call.1} parent=1 // pred_check_branch
      %66 = sbr.rel (0) target = $region37
    $region36: #{tpu_custom_call.1} parent=1 // pred_region
      %67 = dma.done [#allocation3], 256
    $region37: #{tpu_custom_call.1} parent=1 // pred_fallthru
      _
    // Predicated region
    $region38: #{tpu_custom_call.1} parent=1 // pred_check
      _
    $region39: #{tpu_custom_call.1} parent=1 // pred_check_branch
      %69 = sbr.rel (0) target = $region41
    $region40: #{tpu_custom_call.1} parent=1 // pred_region
      %70 = dma.done [#allocation6], 256
    $region41: #{tpu_custom_call.1} parent=1 // pred_fallthru
      _
    // Predicated region
    $region42: #{tpu_custom_call.1} parent=1 // pred_check
      _
    $region43: #{tpu_custom_call.1} parent=1 // pred_check_branch
      %72 = sbr.rel (0) target = $region45
    $region44: #{tpu_custom_call.1} parent=1 // pred_region
      %73 = dma.done [#allocation6], 256
    $region45: #{tpu_custom_call.1} parent=1 // pred_fallthru
      _
    %v75 = vld [vmem:[%s2] sm:$0x1]
    %v76 = vld [vmem:[%s3] sm:$0x1]
    %v77 = vld [vmem:[#allocation2] sm:$0xff]
    %v78 = vld [vmem:[#allocation2 + $0x8] sm:$0xff]
    %vm79 = vcmask 261120
    %v80 = vsel %vm79, %v77, 0.0
    %81 = vadd.xlane.f32.xlu0 %v80
    %v82 = vpop.xlane.xlu0 %81
    %v83 = vsel %vm79, %v78, 0.0
    %84 = vadd.xlane.f32.xlu0 %v83
    %v85 = vpop.xlane.xlu0 %84
    %v86 = vrcp.pop 32.0
    %v87 = vmul.f32 %v82, %v86
    %v88 = vmul.f32 %v85, %v86
    %v89 = vsub.f32 %v77, %v87
    %v90 = vsub.f32 %v78, %v88
    %v91 = vmul.f32 %v89, %v89
    %v92 = vmul.f32 %v90, %v90
    %v93 = vsel %vm79, %v91, 0.0
    %94 = vadd.xlane.f32.xlu0 %v93
    %v95 = vpop.xlane.xlu0 %94
    %v96 = vsel %vm79, %v92, 0.0
    %97 = vadd.xlane.f32.xlu0 %v96
    %v98 = vpop.xlane.xlu0 %97
    %v99 = vmul.f32 %v95, %v86
    %v100 = vmul.f32 %v98, %v86
    %v101 = vadd.f32 %v99, 1e-05
    %v102 = vadd.f32 %v100, 1e-05
    %v103 = vrsqrt.pop %v101
    %v104 = vrsqrt.pop %v102
    %v105 = vmul.f32 %v89, %v103
    %v106 = vmul.f32 %v90, %v104
    %v108 = vlaneseq
    %v109 = vshrl.u32 %v108, 7
    %v110 = vsub.s32 0, %v109
    %v111 = vrot.slane %v75, %v110
    %v113 = vmul.f32 %v105, %v111
    %v114 = vmul.f32 %v106, %v111
    %v116 = vlaneseq
    %v117 = vshrl.u32 %v116, 7
    %v118 = vsub.s32 0, %v117
    %v119 = vrot.slane %v76, %v118
    %v121 = vadd.f32 %v113, %v119
    %v122 = vadd.f32 %v114, %v119
    %v123 = vld [vmem:[#allocation5] sm:$0xff]
    %v124 = vld [vmem:[#allocation5 + $0x8] sm:$0xff]
    %v125 = vsel %vm79, %v123, 0.0
    %126 = vadd.xlane.f32.xlu0 %v125
    %v127 = vpop.xlane.xlu0 %126
    %v128 = vsel %vm79, %v124, 0.0
    %129 = vadd.xlane.f32.xlu0 %v128
    %v130 = vpop.xlane.xlu0 %129
    %v131 = vmul.f32 %v127, %v86
    %v132 = vmul.f32 %v130, %v86
    %v133 = vsub.f32 %v123, %v131
    %v134 = vsub.f32 %v124, %v132
    %v135 = vmul.f32 %v133, %v133
    %v136 = vmul.f32 %v134, %v134
    %v137 = vsel %vm79, %v135, 0.0
    %138 = vadd.xlane.f32.xlu0 %v137
    %v139 = vpop.xlane.xlu0 %138
    %v140 = vsel %vm79, %v136, 0.0
    %141 = vadd.xlane.f32.xlu0 %v140
    %v142 = vpop.xlane.xlu0 %141
    %v143 = vmul.f32 %v139, %v86
    %v144 = vmul.f32 %v142, %v86
    %v145 = vadd.f32 %v143, 1e-05
    %v146 = vadd.f32 %v144, 1e-05
    %v147 = vrsqrt.pop %v145
    %v148 = vrsqrt.pop %v146
    %v149 = vmul.f32 %v133, %v147
    %v150 = vmul.f32 %v134, %v148
    %v151 = vmul.f32 %v149, %v111
    %v152 = vmul.f32 %v150, %v111
    %v153 = vadd.f32 %v151, %v119
    %v154 = vadd.f32 %v152, %v119
    %v155 = vpack.c.bf16 %v122, %v121
    %v156 = vld [vmem:[#allocation7] sm:$0xf]
    %v157 = vld [vmem:[#allocation7 + $0x4] sm:$0xf]
    %v158 = vld [vmem:[#allocation7 + $0x8] sm:$0xf]
    %v159 = vld [vmem:[#allocation7 + $0xc] sm:$0xf]
    %v160 = vld [vmem:[%s5] sm:$0x1]
    %v162 = vlaneseq
    %v163 = vshrl.u32 %v162, 7
    %v164 = vsub.s32 0, %v163
    %v165 = vrot.slane %v160, %v164
    %v171 = vunpack.c.l.b16 %v156
    %v172 = vunpack.c.l.b16 %v157
    %v173 = vunpack.c.l.b16 %v158
    %v174 = vunpack.c.l.b16 %v159
    %v175 = vpack.c.b16 %v172, %v171
    %v176 = vpack.c.b16 %v174, %v173
    %v180 = vsel %vm79, %v155, 0
    %182 = vmatprep.subr.bf16.mxu0 0
    %183 = vmatpush1.bf16.msra.mxu0 %v175
    %184 = vmatprep.subr.bf16.mxu0 0
    %185 = vmatpush1.bf16.msra.mxu0 %v176
    %186 = vmatprep.subr.bf16.mxu0 0
    %187 = vmatpush1.bf16.msra.mxu0 0
    %188 = vmatprep.subr.bf16.mxu0 0
    %189 = vmatpush1.bf16.msra.mxu0 0
    %190 = vmatprep.subr.bf16.mxu0 0
    %191 = vmatpush1.bf16.msra.mxu0 0
    %192 = vmatprep.subr.bf16.mxu0 0
    %193 = vmatpush1.bf16.msra.mxu0 0
    %194 = vmatprep.subr.bf16.mxu0 0
    %195 = vmatpush1.bf16.msra.mxu0 0
    %196 = vmatprep.subr.bf16.mxu0 0
    %197 = vmatpush1.bf16.msra.mxu0 0
    %198 = vmatprep.subr.bf16.mxu0 0
    %199 = vmatpush1.bf16.msra.mxu0 0
    %200 = vmatprep.subr.bf16.mxu0 0
    %201 = vmatpush1.bf16.msra.mxu0 0
    %202 = vmatprep.subr.bf16.mxu0 0
    %203 = vmatpush1.bf16.msra.mxu0 0
    %204 = vmatprep.subr.bf16.mxu0 0
    %205 = vmatpush1.bf16.msra.mxu0 0
    %206 = vmatprep.subr.bf16.mxu0 0
    %207 = vmatpush1.bf16.msra.mxu0 0
    %208 = vmatprep.subr.bf16.mxu0 0
    %209 = vmatpush1.bf16.msra.mxu0 0
    %210 = vmatprep.subr.bf16.mxu0 0
    %211 = vmatpush1.bf16.msra.mxu0 0
    %212 = vmatprep.subr.bf16.mxu0 0
    %213 = vmatpush1.bf16.msra.mxu0 0
    %214 = vmatprep.mubr.bf16.mxu0 0
    %215 = vmatmul.mubr.bf16.gmra.mrb[0].mxu0 %v180
    %v216 = vpop.f32.mrb[0].mxu0
    %v217 = vadd.f32 %v165, %v216
    %v218 = vpop.f32.mrb[0].mxu0
    %v219 = vpop.f32.mrb[0].mxu0
    %v220 = vadd.f32 %v165, %v219
    %v221 = vpop.f32.mrb[0].mxu0
    %222 = vdwg.mxu0
    %v223 = vpack.c.bf16 %v220, %v217
    %v225 = vunpack.c.l.b16 %v223
    %v226 = vunpack.c.h.b16 %v223
    %v227 = vpack.c.b16 %v225, %v225
    %v228 = vpack.c.b16 %v226, %v226
    %vm231 = vcmask 257024
    %232 = vst.msk [vmem:[#allocation8] sm:$0xf] %vm231, %v227
    %233 = vst.msk [vmem:[#allocation8 + $0x4] sm:$0xf] %vm231, %v228
    %v234 = vpack.c.bf16 %v154, %v153
    %v235 = vld [vmem:[%s6] sm:$0xf]
    %v236 = vld [vmem:[%s6 + $0x4] sm:$0xf]
    %v237 = vld [vmem:[%s6 + $0x8] sm:$0xf]
    %v238 = vld [vmem:[%s6 + $0xc] sm:$0xf]
    %v239 = vld [vmem:[%s7] sm:$0x1]
    %v241 = vlaneseq
    %v242 = vshrl.u32 %v241, 7
    %v243 = vsub.s32 0, %v242
    %v244 = vrot.slane %v239, %v243
    %v250 = vunpack.c.l.b16 %v235
    %v251 = vunpack.c.l.b16 %v236
    %v252 = vunpack.c.l.b16 %v237
    %v253 = vunpack.c.l.b16 %v238
    %v254 = vpack.c.b16 %v251, %v250
    %v255 = vpack.c.b16 %v253, %v252
    %v259 = vsel %vm79, %v234, 0
    %261 = vmatprep.subr.bf16.mxu0 0
    %262 = vmatpush1.bf16.msra.mxu0 %v254
    %263 = vmatprep.subr.bf16.mxu0 0
    %264 = vmatpush1.bf16.msra.mxu0 %v255
    %265 = vmatprep.subr.bf16.mxu0 0
    %266 = vmatpush1.bf16.msra.mxu0 0
    %267 = vmatprep.subr.bf16.mxu0 0
    %268 = vmatpush1.bf16.msra.mxu0 0
    %269 = vmatprep.subr.bf16.mxu0 0
    %270 = vmatpush1.bf16.msra.mxu0 0
    %271 = vmatprep.subr.bf16.mxu0 0
    %272 = vmatpush1.bf16.msra.mxu0 0
    %273 = vmatprep.subr.bf16.mxu0 0
    %274 = vmatpush1.bf16.msra.mxu0 0
    %275 = vmatprep.subr.bf16.mxu0 0
    %276 = vmatpush1.bf16.msra.mxu0 0
    %277 = vmatprep.subr.bf16.mxu0 0
    %278 = vmatpush1.bf16.msra.mxu0 0
    %279 = vmatprep.subr.bf16.mxu0 0
    %280 = vmatpush1.bf16.msra.mxu0 0
    %281 = vmatprep.subr.bf16.mxu0 0
    %282 = vmatpush1.bf16.msra.mxu0 0
    %283 = vmatprep.subr.bf16.mxu0 0
    %284 = vmatpush1.bf16.msra.mxu0 0
    %285 = vmatprep.subr.bf16.mxu0 0
    %286 = vmatpush1.bf16.msra.mxu0 0
    %287 = vmatprep.subr.bf16.mxu0 0
    %288 = vmatpush1.bf16.msra.mxu0 0
    %289 = vmatprep.subr.bf16.mxu0 0
    %290 = vmatpush1.bf16.msra.mxu0 0
    %291 = vmatprep.subr.bf16.mxu0 0
    %292 = vmatpush1.bf16.msra.mxu0 0
    %293 = vmatprep.mubr.bf16.mxu0 0
    %294 = vmatmul.mubr.bf16.gmra.mrb[0].mxu0 %v259
    %v295 = vpop.f32.mrb[0].mxu0
    %v296 = vadd.f32 %v244, %v295
    %v297 = vpop.f32.mrb[0].mxu0
    %v298 = vpop.f32.mrb[0].mxu0
    %v299 = vadd.f32 %v244, %v298
    %v300 = vpop.f32.mrb[0].mxu0
    %301 = vdwg.mxu0
    %v302 = vpack.c.bf16 %v299, %v296
    %v304 = vunpack.c.l.b16 %v302
    %v305 = vunpack.c.h.b16 %v302
    %v306 = vpack.c.b16 %v304, %v304
    %v307 = vpack.c.b16 %v305, %v305
    %vm310 = vcmask 519168
    %311 = vst.msk [vmem:[#allocation9] sm:$0xf] %vm310, %v306
    %312 = vst.msk [vmem:[#allocation9 + $0x4] sm:$0xf] %vm310, %v307
    // Predicated region
    $region46: #{tpu_custom_call.1} parent=1 // pred_check
      _
    $region47: #{tpu_custom_call.1} parent=1 // pred_check_branch
      %314 = sbr.rel (0) target = $region49
    $region48: #{tpu_custom_call.1} parent=1 // pred_region
      %s316 = ssub.s32 128, 128
      %317 = vsyncadd [#allocation4], %s316
      %s318 = sshll.u32 [#allocation8], 4
      %s319 = int_to_ptr.vmem [resolvable:$true] %s318
      %324 = dma.vmem_to_hbm [thread:$0]  %s319, 128, %s8, [#allocation4], 64, 64, 4
    $region49: #{tpu_custom_call.1} parent=1 // pred_fallthru
      _
    // Predicated region
    $region50: #{tpu_custom_call.1} parent=1 // pred_check
      _
    $region51: #{tpu_custom_call.1} parent=1 // pred_check_branch
      %326 = sbr.rel (0) target = $region53
    $region52: #{tpu_custom_call.1} parent=1 // pred_region
      %s328 = ssub.s32 128, 128
      %329 = vsyncadd [#allocation10], %s328
      %s330 = sshll.u32 [#allocation9], 4
      %s331 = int_to_ptr.vmem [resolvable:$true] %s330
      %336 = dma.vmem_to_hbm [thread:$0]  %s331, 128, %s9, [#allocation10], 64, 64, 4
    $region53: #{tpu_custom_call.1} parent=1 // pred_fallthru
      _
    // Predicated region
    $region54: #{tpu_custom_call.1} parent=1 // pred_check
      _
    $region55: #{tpu_custom_call.1} parent=1 // pred_check_branch
      %338 = sbr.rel (0) target = $region57
    $region56: #{tpu_custom_call.1} parent=1 // pred_region
      %339 = dma.done [#allocation4], 128
    $region57: #{tpu_custom_call.1} parent=1 // pred_fallthru
      _
    // Predicated region
    $region58: #{tpu_custom_call.1} parent=1 // pred_check
      _
    $region59: #{tpu_custom_call.1} parent=1 // pred_check_branch
      %341 = sbr.rel (0) target = $region61
    $region60: #{tpu_custom_call.1} parent=1 // pred_region
      %342 = dma.done [#allocation10], 128
    $region61: #{tpu_custom_call.1} parent=1 // pred_fallthru
      _
    %343 = vsyncpa [#allocation3], 1
    %344 = vsyncpa [#allocation6], 1
    %345 = vsyncpa [#allocation4], 1
    %346 = vsyncpa [#allocation10], 1

</llo_original>
